<compile_context>
chip_gen: v7x
topology: tpu7x:2x2x1
jax: 0.10.0
libtpu: 0.0.40
codegen_flags: <defaults>
</compile_context>

<pallas_src>
import jax
import jax.numpy as jnp
from jax import lax
from jax.experimental import pallas as pl
from jax.experimental.pallas import tpu as pltpu

_EPS = 1e-5


# ---------------------------------------------------------------------------
# Fused kernel: BN1 -> ReLU -> conv3x3 -> BN2 -> ReLU -> conv1x1 -> + x
# Activations are (N*H, W*C); per-channel quantities live tiled along lanes.
# ---------------------------------------------------------------------------
def _residual_block_kernel(x_ref, sinv_ref, g1_ref, b1_ref, pup_ref, pdn_ref,
                           wband_ref, b3_ref, g2_ref, b2_ref, w1_ref, bq_ref,
                           o_ref):
    f32 = jnp.float32
    x = x_ref[...]                           # (N*H, W*C)
    sinv = sinv_ref[...]                     # (W*C, W*C) same-channel sum * 1/count
    wc = x.shape[1]

    def bn_relu(v, g, b):
        # Per-channel (lane % C) batch-norm with training statistics, two-pass.
        # dot with the 0/1 "same channel" matrix folds lanes of one channel; the
        # row reduction finishes the batch sum (1/count already folded into sinv).
        mu = jnp.sum(jnp.dot(v, sinv, preferred_element_type=f32),
                     axis=0, keepdims=True)                       # (1, W*C)
        vc = v - mu
        var = jnp.sum(jnp.dot(vc * vc, sinv, preferred_element_type=f32),
                      axis=0, keepdims=True)
        return jnp.maximum(vc * lax.rsqrt(var + _EPS) * g + b, 0.0)

    # BN1 + ReLU
    h1 = bn_relu(x, g1_ref[...], b1_ref[...])                      # (N*H, W*C)

    # 3x3 same-pad conv: y-shifted rows (with per-image zero padding baked into
    # the constant Pup/Pdn matrices) contracted against banded weights; each
    # band implements the same-padded x-direction conv + channel mixing.
    top = jnp.dot(pup_ref[...], h1, preferred_element_type=f32)    # rows y-1
    bot = jnp.dot(pdn_ref[...], h1, preferred_element_type=f32)    # rows y+1
    c3 = (jnp.dot(top, wband_ref[0 * wc:1 * wc, :], preferred_element_type=f32)
          + jnp.dot(h1, wband_ref[1 * wc:2 * wc, :], preferred_element_type=f32)
          + jnp.dot(bot, wband_ref[2 * wc:3 * wc, :], preferred_element_type=f32)
          + b3_ref[...])

    # BN2 + ReLU
    h2 = bn_relu(c3, g2_ref[...], b2_ref[...])

    # 1x1 conv (block-diagonal weight) + residual add
    y = jnp.dot(h2, w1_ref[...], preferred_element_type=f32) + bq_ref[...]
    o_ref[...] = x + y


def _full_spec(shape):
    return pl.BlockSpec(shape, lambda i: (0, 0))


# ---------------------------------------------------------------------------
# Wrapper: layout + constant weight transforms + the single pallas_call.
# ---------------------------------------------------------------------------
@jax.jit
def residual_block(x_nchw, params):
    n, c, h, w = x_nchw.shape
    wc = w * c
    nh = n * h
    f32 = jnp.float32

    # Sized for the fully-fused single-call path (everything resident in VMEM).
    assert nh * wc * 4 <= 4 * 1024 * 1024, "use the tiled multi-kernel path"

    # NCHW -> (N*H, W*C): row-major NHWC grouped by (n, h) rows, so C packs into
    # a 64-wide lane dimension.  Single fused copy in XLA (and one on the way out).
    x2 = jnp.transpose(x_nchw.astype(f32), (0, 2, 3, 1)).reshape(nh, wc)

    # --- tiny constant / weight preprocessing (folded by XLA) ------------------
    def tile_row(p):                                   # per-channel -> per-lane
        return jnp.tile(p.reshape(1, c).astype(f32), (1, w))

    g1t, b1t = tile_row(params["g1"]), tile_row(params["b1"])
    g2t, b2t = tile_row(params["g2"]), tile_row(params["b2"])
    b3t, bqt = tile_row(params["b3"]), tile_row(params["bq"])

    # Same-channel lane-sum matrix with 1/count folded in: lane j of
    # (v @ sinv).sum(rows) is the batch mean of channel j % C.
    lane = jnp.arange(wc)
    sinv = ((lane[:, None] % c) == (lane[None, :] % c)).astype(f32) / float(n * h * w)

    # Row-shift matrices: Pup picks row y-1 (zero for y == 0), Pdn picks row y+1
    # (zero for y == H-1); image boundaries never mix because shifts of exactly
    # one row only cross boundaries at y == 0 / y == H-1, which are masked.
    r = jnp.arange(nh)
    pup = ((r[None, :] == r[:, None] - 1) & (r[:, None] % h != 0)).astype(f32)
    pdn = ((r[None, :] == r[:, None] + 1) & (r[:, None] % h != h - 1)).astype(f32)

    # Banded conv3x3 weights: block dy (W*C, W*C) maps the x-layout (x*C + c_in)
    # of input row y+dy-1 to (x*C + c_out), with SAME zero padding along x
    # implemented by truncating the shifted block-diagonal.
    eye = jnp.eye(w, dtype=f32)
    bands = []
    for dy in range(3):
        band = jnp.zeros((wc, wc), f32)
        for dx in range(3):
            k = jnp.kron(eye, params["w3"][dy, dx].astype(f32))   # (wc, wc)
            k = jnp.pad(k, ((c, c), (0, 0)))
            band = band + k[(2 - dx) * c:(2 - dx) * c + wc, :]
        bands.append(band)
    wband = jnp.concatenate(bands, axis=0)                         # (3*wc, wc)

    # 1x1 conv as a block-diagonal (W*C, W*C) matrix.
    w1big = jnp.kron(eye, params["w1"].astype(f32))

    out2 = pl.pallas_call(
        _residual_block_kernel,
        out_shape=jax.ShapeDtypeStruct((nh, wc), f32),
        grid=(1,),
        in_specs=[_full_spec((nh, wc)),        # x
                  _full_spec((wc, wc)),        # sinv
                  _full_spec((1, wc)),         # gamma1
                  _full_spec((1, wc)),         # beta1
                  _full_spec((nh, nh)),        # Pup
                  _full_spec((nh, nh)),        # Pdn
                  _full_spec((3 * wc, wc)),    # banded conv3x3 weights
                  _full_spec((1, wc)),         # conv3x3 bias
                  _full_spec((1, wc)),         # gamma2
                  _full_spec((1, wc)),         # beta2
                  _full_spec((wc, wc)),        # block-diag conv1x1 weights
                  _full_spec((1, wc))],        # conv1x1 bias
        out_specs=_full_spec((nh, wc)),
        input_output_aliases={0: 0},           # reuse x2's HBM buffer for out
        compiler_params=pltpu.CompilerParams(
            dimension_semantics=("arbitrary",)),
    )(x2, sinv, g1t, b1t, pup, pdn, wband, b3t, g2t, b2t, w1big, bqt)

    return jnp.transpose(out2.reshape(n, h, w, c), (0, 3, 1, 2))


# ---------------------------------------------------------------------------
# Parameters / pure-JAX reference / test.
# ---------------------------------------------------------------------------
def make_params(key, dim):
    k = jax.random.split(key, 8)
    c = dim
    return dict(
        g1=1.0 + 0.1 * jax.random.normal(k[0], (1, c), jnp.float32),
        b1=0.1 * jax.random.normal(k[1], (1, c), jnp.float32),
        w3=jax.random.normal(k[2], (3, 3, c, c), jnp.float32) / jnp.sqrt(9.0 * c),
        b3=0.1 * jax.random.normal(k[3], (1, c), jnp.float32),
        g2=1.0 + 0.1 * jax.random.normal(k[4], (1, c), jnp.float32),
        b2=0.1 * jax.random.normal(k[5], (1, c), jnp.float32),
        w1=jax.random.normal(k[6], (c, c), jnp.float32) / jnp.sqrt(float(c)),
        bq=0.1 * jax.random.normal(k[7], (1, c), jnp.float32),
    )


def residual_block_ref(x_nchw, p):
    """Pure-JAX reference of the PyTorch forward (training-mode BN)."""
    x = jnp.transpose(x_nchw, (0, 2, 3, 1)).astype(jnp.float32)  # NHWC
    mu = x.mean(axis=(0, 1, 2), keepdims=True)
    var = ((x - mu) ** 2).mean(axis=(0, 1, 2), keepdims=True)
    h = jnp.maximum((x - mu) / jnp.sqrt(var + _EPS) * p["g1"] + p["b1"], 0.0)
    c3 = lax.conv_general_dilated(
        h, p["w3"], window_strides=(1, 1), padding="SAME",
        dimension_numbers=("NHWC", "HWIO", "NHWC")) + p["b3"]
    mu2 = c3.mean(axis=(0, 1, 2), keepdims=True)
    var2 = ((c3 - mu2) ** 2).mean(axis=(0, 1, 2), keepdims=True)
    h2 = jnp.maximum((c3 - mu2) / jnp.sqrt(var2 + _EPS) * p["g2"] + p["b2"], 0.0)
    y = jnp.einsum("nhwc,cd->nhwd", h2, p["w1"]) + p["bq"]
    return jnp.transpose(x + y, (0, 3, 1, 2))


if __name__ == "__main__":
    key = jax.random.PRNGKey(0)
    k_x, k_p = jax.random.split(key)

    N, C, H, W = 2, 4, 16, 16          # matches nn.Conv2d(dim, dim, ...) with dim=4
    x = jax.random.normal(k_x, (N, C, H, W), jnp.float32)
    params = make_params(k_p, C)

    out = jax.block_until_ready(residual_block(x, params))
    ref = residual_block_ref(x, params)

    assert out.shape == (N, C, H, W)
    max_err = float(jnp.max(jnp.abs(out - ref)))
    assert jnp.allclose(out, ref, rtol=2e-3, atol=2e-3), max_err

    print("KERNEL_OK")
</pallas_src>

<mosaic_0001>
module attributes {stable_mosaic.version = 11 : i64} {
  func.func @_residual_block_kernel(%arg0: i32, %arg1: memref<32x64xf32, #tpu.memory_space<vmem>>, %arg2: memref<64x64xf32, #tpu.memory_space<vmem>>, %arg3: memref<1x64xf32, #tpu.memory_space<vmem>>, %arg4: memref<1x64xf32, #tpu.memory_space<vmem>>, %arg5: memref<32x32xf32, #tpu.memory_space<vmem>>, %arg6: memref<32x32xf32, #tpu.memory_space<vmem>>, %arg7: memref<192x64xf32, #tpu.memory_space<vmem>>, %arg8: memref<1x64xf32, #tpu.memory_space<vmem>>, %arg9: memref<1x64xf32, #tpu.memory_space<vmem>>, %arg10: memref<1x64xf32, #tpu.memory_space<vmem>>, %arg11: memref<64x64xf32, #tpu.memory_space<vmem>>, %arg12: memref<1x64xf32, #tpu.memory_space<vmem>>, %arg13: memref<32x64xf32, #tpu.memory_space<vmem>>) attributes {dimension_semantics = [#tpu.dimension_semantics<arbitrary>], iteration_bounds = array<i64: 1>, scalar_prefetch = 0 : i64, scratch_operands = 0 : i64, tpu.core_type = #tpu.core_type<tc>, window_params = [{pipeline_mode = #tpu.pipeline_mode<synchronous>, transform_indices = @transform_0, window_bounds = array<i64: 32, 64>}, {pipeline_mode = #tpu.pipeline_mode<synchronous>, transform_indices = @transform_1, window_bounds = array<i64: 64, 64>}, {pipeline_mode = #tpu.pipeline_mode<synchronous>, transform_indices = @transform_2, window_bounds = array<i64: 1, 64>}, {pipeline_mode = #tpu.pipeline_mode<synchronous>, transform_indices = @transform_3, window_bounds = array<i64: 1, 64>}, {pipeline_mode = #tpu.pipeline_mode<synchronous>, transform_indices = @transform_4, window_bounds = array<i64: 32, 32>}, {pipeline_mode = #tpu.pipeline_mode<synchronous>, transform_indices = @transform_5, window_bounds = array<i64: 32, 32>}, {pipeline_mode = #tpu.pipeline_mode<synchronous>, transform_indices = @transform_6, window_bounds = array<i64: 192, 64>}, {pipeline_mode = #tpu.pipeline_mode<synchronous>, transform_indices = @transform_7, window_bounds = array<i64: 1, 64>}, {pipeline_mode = #tpu.pipeline_mode<synchronous>, transform_indices = @transform_8, window_bounds = array<i64: 1, 64>}, {pipeline_mode = #tpu.pipeline_mode<synchronous>, transform_indices = @transform_9, window_bounds = array<i64: 1, 64>}, {pipeline_mode = #tpu.pipeline_mode<synchronous>, transform_indices = @transform_10, window_bounds = array<i64: 64, 64>}, {pipeline_mode = #tpu.pipeline_mode<synchronous>, transform_indices = @transform_11, window_bounds = array<i64: 1, 64>}, {pipeline_mode = #tpu.pipeline_mode<synchronous>, transform_indices = @transform_12, window_bounds = array<i64: 32, 64>}]} {
    %c0 = arith.constant 0 : index
    %c0_0 = arith.constant 0 : index
    %0 = vector.load %arg1[%c0, %c0_0] : memref<32x64xf32, #tpu.memory_space<vmem>>, vector<32x64xf32>
    %c0_1 = arith.constant 0 : index
    %c0_2 = arith.constant 0 : index
    %1 = vector.load %arg2[%c0_1, %c0_2] : memref<64x64xf32, #tpu.memory_space<vmem>>, vector<64x64xf32>
    %c0_3 = arith.constant 0 : index
    %c0_4 = arith.constant 0 : index
    %2 = vector.load %arg3[%c0_3, %c0_4] : memref<1x64xf32, #tpu.memory_space<vmem>>, vector<1x64xf32>
    %c0_5 = arith.constant 0 : index
    %c0_6 = arith.constant 0 : index
    %3 = vector.load %arg4[%c0_5, %c0_6] : memref<1x64xf32, #tpu.memory_space<vmem>>, vector<1x64xf32>
    %cst = arith.constant dense<0.000000e+00> : vector<32x64xf32>
    %4 = tpu.matmul %0, %1, %cst {dimension_numbers = #tpu.dot_dimension_numbers<[1], [0], [0], [1], [0, 0, 1, 1], [], []>} : vector<32x64xf32>, vector<64x64xf32>, vector<32x64xf32> -> vector<32x64xf32>
    %cst_7 = arith.constant dense<0.000000e+00> : vector<64xf32>
    %5 = vector.multi_reduction <add>, %4, %cst_7 [0] : vector<32x64xf32> to vector<64xf32>
    %6 = vector.shape_cast %5 : vector<64xf32> to vector<1x64xf32>
    %7 = vector.broadcast %6 : vector<1x64xf32> to vector<32x64xf32>
    %8 = arith.subf %0, %7 : vector<32x64xf32>
    %9 = arith.mulf %8, %8 : vector<32x64xf32>
    %cst_8 = arith.constant dense<0.000000e+00> : vector<32x64xf32>
    %10 = tpu.matmul %9, %1, %cst_8 {dimension_numbers = #tpu.dot_dimension_numbers<[1], [0], [0], [1], [0, 0, 1, 1], [], []>} : vector<32x64xf32>, vector<64x64xf32>, vector<32x64xf32> -> vector<32x64xf32>
    %cst_9 = arith.constant dense<0.000000e+00> : vector<64xf32>
    %11 = vector.multi_reduction <add>, %10, %cst_9 [0] : vector<32x64xf32> to vector<64xf32>
    %12 = vector.shape_cast %11 : vector<64xf32> to vector<1x64xf32>
    %cst_10 = arith.constant 9.99999974E-6 : f32
    %13 = vector.broadcast %cst_10 : f32 to vector<1x64xf32>
    %14 = arith.addf %12, %13 : vector<1x64xf32>
    %15 = math.rsqrt %14 : vector<1x64xf32>
    %16 = vector.broadcast %15 : vector<1x64xf32> to vector<32x64xf32>
    %17 = arith.mulf %8, %16 : vector<32x64xf32>
    %18 = vector.broadcast %2 : vector<1x64xf32> to vector<32x64xf32>
    %19 = arith.mulf %17, %18 : vector<32x64xf32>
    %20 = vector.broadcast %3 : vector<1x64xf32> to vector<32x64xf32>
    %21 = arith.addf %19, %20 : vector<32x64xf32>
    %cst_11 = arith.constant 0.000000e+00 : f32
    %22 = vector.broadcast %cst_11 : f32 to vector<32x64xf32>
    %23 = arith.maximumf %21, %22 : vector<32x64xf32>
    %c0_12 = arith.constant 0 : index
    %c0_13 = arith.constant 0 : index
    %24 = vector.load %arg5[%c0_12, %c0_13] : memref<32x32xf32, #tpu.memory_space<vmem>>, vector<32x32xf32>
    %cst_14 = arith.constant dense<0.000000e+00> : vector<32x64xf32>
    %25 = tpu.matmul %24, %23, %cst_14 {dimension_numbers = #tpu.dot_dimension_numbers<[1], [0], [0], [1], [0, 0, 1, 1], [], []>} : vector<32x32xf32>, vector<32x64xf32>, vector<32x64xf32> -> vector<32x64xf32>
    %c0_15 = arith.constant 0 : index
    %c0_16 = arith.constant 0 : index
    %26 = vector.load %arg6[%c0_15, %c0_16] : memref<32x32xf32, #tpu.memory_space<vmem>>, vector<32x32xf32>
    %cst_17 = arith.constant dense<0.000000e+00> : vector<32x64xf32>
    %27 = tpu.matmul %26, %23, %cst_17 {dimension_numbers = #tpu.dot_dimension_numbers<[1], [0], [0], [1], [0, 0, 1, 1], [], []>} : vector<32x32xf32>, vector<32x64xf32>, vector<32x64xf32> -> vector<32x64xf32>
    %c0_18 = arith.constant 0 : index
    %c0_19 = arith.constant 0 : index
    %28 = vector.load %arg7[%c0_18, %c0_19] : memref<192x64xf32, #tpu.memory_space<vmem>>, vector<64x64xf32>
    %cst_20 = arith.constant dense<0.000000e+00> : vector<32x64xf32>
    %29 = tpu.matmul %25, %28, %cst_20 {dimension_numbers = #tpu.dot_dimension_numbers<[1], [0], [0], [1], [0, 0, 1, 1], [], []>} : vector<32x64xf32>, vector<64x64xf32>, vector<32x64xf32> -> vector<32x64xf32>
    %c64 = arith.constant 64 : index
    %c0_21 = arith.constant 0 : index
    %30 = vector.load %arg7[%c64, %c0_21] : memref<192x64xf32, #tpu.memory_space<vmem>>, vector<64x64xf32>
    %cst_22 = arith.constant dense<0.000000e+00> : vector<32x64xf32>
    %31 = tpu.matmul %23, %30, %cst_22 {dimension_numbers = #tpu.dot_dimension_numbers<[1], [0], [0], [1], [0, 0, 1, 1], [], []>} : vector<32x64xf32>, vector<64x64xf32>, vector<32x64xf32> -> vector<32x64xf32>
    %32 = arith.addf %29, %31 : vector<32x64xf32>
    %c128 = arith.constant 128 : index
    %c0_23 = arith.constant 0 : index
    %33 = vector.load %arg7[%c128, %c0_23] : memref<192x64xf32, #tpu.memory_space<vmem>>, vector<64x64xf32>
    %cst_24 = arith.constant dense<0.000000e+00> : vector<32x64xf32>
    %34 = tpu.matmul %27, %33, %cst_24 {dimension_numbers = #tpu.dot_dimension_numbers<[1], [0], [0], [1], [0, 0, 1, 1], [], []>} : vector<32x64xf32>, vector<64x64xf32>, vector<32x64xf32> -> vector<32x64xf32>
    %35 = arith.addf %32, %34 : vector<32x64xf32>
    %c0_25 = arith.constant 0 : index
    %c0_26 = arith.constant 0 : index
    %36 = vector.load %arg8[%c0_25, %c0_26] : memref<1x64xf32, #tpu.memory_space<vmem>>, vector<1x64xf32>
    %37 = vector.broadcast %36 : vector<1x64xf32> to vector<32x64xf32>
    %38 = arith.addf %35, %37 : vector<32x64xf32>
    %c0_27 = arith.constant 0 : index
    %c0_28 = arith.constant 0 : index
    %39 = vector.load %arg9[%c0_27, %c0_28] : memref<1x64xf32, #tpu.memory_space<vmem>>, vector<1x64xf32>
    %c0_29 = arith.constant 0 : index
    %c0_30 = arith.constant 0 : index
    %40 = vector.load %arg10[%c0_29, %c0_30] : memref<1x64xf32, #tpu.memory_space<vmem>>, vector<1x64xf32>
    %cst_31 = arith.constant dense<0.000000e+00> : vector<32x64xf32>
    %41 = tpu.matmul %38, %1, %cst_31 {dimension_numbers = #tpu.dot_dimension_numbers<[1], [0], [0], [1], [0, 0, 1, 1], [], []>} : vector<32x64xf32>, vector<64x64xf32>, vector<32x64xf32> -> vector<32x64xf32>
    %cst_32 = arith.constant dense<0.000000e+00> : vector<64xf32>
    %42 = vector.multi_reduction <add>, %41, %cst_32 [0] : vector<32x64xf32> to vector<64xf32>
    %43 = vector.shape_cast %42 : vector<64xf32> to vector<1x64xf32>
    %44 = vector.broadcast %43 : vector<1x64xf32> to vector<32x64xf32>
    %45 = arith.subf %38, %44 : vector<32x64xf32>
    %46 = arith.mulf %45, %45 : vector<32x64xf32>
    %cst_33 = arith.constant dense<0.000000e+00> : vector<32x64xf32>
    %47 = tpu.matmul %46, %1, %cst_33 {dimension_numbers = #tpu.dot_dimension_numbers<[1], [0], [0], [1], [0, 0, 1, 1], [], []>} : vector<32x64xf32>, vector<64x64xf32>, vector<32x64xf32> -> vector<32x64xf32>
    %cst_34 = arith.constant dense<0.000000e+00> : vector<64xf32>
    %48 = vector.multi_reduction <add>, %47, %cst_34 [0] : vector<32x64xf32> to vector<64xf32>
    %49 = vector.shape_cast %48 : vector<64xf32> to vector<1x64xf32>
    %cst_35 = arith.constant 9.99999974E-6 : f32
    %50 = vector.broadcast %cst_35 : f32 to vector<1x64xf32>
    %51 = arith.addf %49, %50 : vector<1x64xf32>
    %52 = math.rsqrt %51 : vector<1x64xf32>
    %53 = vector.broadcast %52 : vector<1x64xf32> to vector<32x64xf32>
    %54 = arith.mulf %45, %53 : vector<32x64xf32>
    %55 = vector.broadcast %39 : vector<1x64xf32> to vector<32x64xf32>
    %56 = arith.mulf %54, %55 : vector<32x64xf32>
    %57 = vector.broadcast %40 : vector<1x64xf32> to vector<32x64xf32>
    %58 = arith.addf %56, %57 : vector<32x64xf32>
    %cst_36 = arith.constant 0.000000e+00 : f32
    %59 = vector.broadcast %cst_36 : f32 to vector<32x64xf32>
    %60 = arith.maximumf %58, %59 : vector<32x64xf32>
    %c0_37 = arith.constant 0 : index
    %c0_38 = arith.constant 0 : index
    %61 = vector.load %arg11[%c0_37, %c0_38] : memref<64x64xf32, #tpu.memory_space<vmem>>, vector<64x64xf32>
    %cst_39 = arith.constant dense<0.000000e+00> : vector<32x64xf32>
    %62 = tpu.matmul %60, %61, %cst_39 {dimension_numbers = #tpu.dot_dimension_numbers<[1], [0], [0], [1], [0, 0, 1, 1], [], []>} : vector<32x64xf32>, vector<64x64xf32>, vector<32x64xf32> -> vector<32x64xf32>
    %c0_40 = arith.constant 0 : index
    %c0_41 = arith.constant 0 : index
    %63 = vector.load %arg12[%c0_40, %c0_41] : memref<1x64xf32, #tpu.memory_space<vmem>>, vector<1x64xf32>
    %64 = vector.broadcast %63 : vector<1x64xf32> to vector<32x64xf32>
    %65 = arith.addf %62, %64 : vector<32x64xf32>
    %66 = arith.addf %0, %65 : vector<32x64xf32>
    %c0_42 = arith.constant 0 : index
    %c0_43 = arith.constant 0 : index
    %67 = vector.load %arg13[%c0_42, %c0_43] : memref<32x64xf32, #tpu.memory_space<vmem>>, vector<32x64xf32>
    tpu.vector_store %arg13[%c0_42, %c0_43], %66 {strides = array<i32>} : memref<32x64xf32, #tpu.memory_space<vmem>>, vector<32x64xf32>,
    return
  }
  func.func @transform_0(%arg0: i32) -> (i32, i32) {
    %c0_i32 = arith.constant 0 : i32
    %c0_i32_0 = arith.constant 0 : i32
    %c0_i32_1 = arith.constant 0 : i32
    return %c0_i32, %c0_i32_0 : i32, i32
  }
  func.func @transform_1(%arg0: i32) -> (i32, i32) {
    %c0_i32 = arith.constant 0 : i32
    %c0_i32_0 = arith.constant 0 : i32
    %c0_i32_1 = arith.constant 0 : i32
    return %c0_i32, %c0_i32_0 : i32, i32
  }
  func.func @transform_2(%arg0: i32) -> (i32, i32) {
    %c0_i32 = arith.constant 0 : i32
    %c0_i32_0 = arith.constant 0 : i32
    %c0_i32_1 = arith.constant 0 : i32
    return %c0_i32, %c0_i32_0 : i32, i32
  }
  func.func @transform_3(%arg0: i32) -> (i32, i32) {
    %c0_i32 = arith.constant 0 : i32
    %c0_i32_0 = arith.constant 0 : i32
    %c0_i32_1 = arith.constant 0 : i32
    return %c0_i32, %c0_i32_0 : i32, i32
  }
  func.func @transform_4(%arg0: i32) -> (i32, i32) {
    %c0_i32 = arith.constant 0 : i32
    %c0_i32_0 = arith.constant 0 : i32
    %c0_i32_1 = arith.constant 0 : i32
    return %c0_i32, %c0_i32_0 : i32, i32
  }
  func.func @transform_5(%arg0: i32) -> (i32, i32) {
    %c0_i32 = arith.constant 0 : i32
    %c0_i32_0 = arith.constant 0 : i32
    %c0_i32_1 = arith.constant 0 : i32
    return %c0_i32, %c0_i32_0 : i32, i32
  }
  func.func @transform_6(%arg0: i32) -> (i32, i32) {
    %c0_i32 = arith.constant 0 : i32
    %c0_i32_0 = arith.constant 0 : i32
    %c0_i32_1 = arith.constant 0 : i32
    return %c0_i32, %c0_i32_0 : i32, i32
  }
  func.func @transform_7(%arg0: i32) -> (i32, i32) {
    %c0_i32 = arith.constant 0 : i32
    %c0_i32_0 = arith.constant 0 : i32
    %c0_i32_1 = arith.constant 0 : i32
    return %c0_i32, %c0_i32_0 : i32, i32
  }
  func.func @transform_8(%arg0: i32) -> (i32, i32) {
    %c0_i32 = arith.constant 0 : i32
    %c0_i32_0 = arith.constant 0 : i32
    %c0_i32_1 = arith.constant 0 : i32
    return %c0_i32, %c0_i32_0 : i32, i32
  }
  func.func @transform_9(%arg0: i32) -> (i32, i32) {
    %c0_i32 = arith.constant 0 : i32
    %c0_i32_0 = arith.constant 0 : i32
    %c0_i32_1 = arith.constant 0 : i32
    return %c0_i32, %c0_i32_0 : i32, i32
  }
  func.func @transform_10(%arg0: i32) -> (i32, i32) {
    %c0_i32 = arith.constant 0 : i32
    %c0_i32_0 = arith.constant 0 : i32
    %c0_i32_1 = arith.constant 0 : i32
    return %c0_i32, %c0_i32_0 : i32, i32
  }
  func.func @transform_11(%arg0: i32) -> (i32, i32) {
    %c0_i32 = arith.constant 0 : i32
    %c0_i32_0 = arith.constant 0 : i32
    %c0_i32_1 = arith.constant 0 : i32
    return %c0_i32, %c0_i32_0 : i32, i32
  }
  func.func @transform_12(%arg0: i32) -> (i32, i32) {
    %c0_i32 = arith.constant 0 : i32
    %c0_i32_0 = arith.constant 0 : i32
    %c0_i32_1 = arith.constant 0 : i32
    return %c0_i32, %c0_i32_0 : i32, i32
  }
}

</mosaic_0001>

<llo_original>
// kernel: residual_block.1
$region0: #{residual_block.1}
  #allocation0 [shape = 'u32[]', space=smem, size = 0x4, offset = 0x4, fixed_abs, tag = 'smem constant byte address 0x4 - core index']
  #allocation1 [shape = 'u32[144,128]{1,0:T(1,128)}', space=vmem, size = 0x12000, scoped, tag = 'internal scratch']
  %s0 = inlined_call_operand.vmem [shape: f32[32,64], index: 0, kind: input, shape index: {}, may-alias: {0,12}]
  %s1 = inlined_call_operand.vmem [shape: f32[64,64], index: 1, kind: input, shape index: {}]
  %s2 = inlined_call_operand.vmem [shape: f32[1,64], index: 2, kind: input, shape index: {}]
  %s3 = inlined_call_operand.vmem [shape: f32[1,64], index: 3, kind: input, shape index: {}]
  %s4 = inlined_call_operand.vmem [shape: f32[32,32], index: 4, kind: input, shape index: {}]
  %s5 = inlined_call_operand.vmem [shape: f32[32,32], index: 5, kind: input, shape index: {}]
  %s6 = inlined_call_operand.vmem [shape: f32[192,64], index: 6, kind: input, shape index: {}]
  %s7 = inlined_call_operand.vmem [shape: f32[1,64], index: 7, kind: input, shape index: {}]
  %s8 = inlined_call_operand.vmem [shape: f32[1,64], index: 8, kind: input, shape index: {}]
  %s9 = inlined_call_operand.vmem [shape: f32[1,64], index: 9, kind: input, shape index: {}]
  %s10 = inlined_call_operand.vmem [shape: f32[64,64], index: 10, kind: input, shape index: {}]
  %s11 = inlined_call_operand.vmem [shape: f32[1,64], index: 11, kind: input, shape index: {}]
  %s12 = inlined_call_operand.vmem [shape: f32[32,64], index: 12, kind: output, shape index: {}, may-alias: {0,12}]
  %s13 = sld [smem:[#allocation0]]
  $region58: #{residual_block.1} parent=0
    _
  %s15 = ssub.s32 1, %s13
  %s16 = scalar_select 0, %s15, %s13
  // Predicated region
  $region2: #{residual_block.1} parent=0 // pred_check
    _
  $region3: #{residual_block.1} parent=0 // pred_check_branch
    %18 = sbr.rel (0) target = $region5
  $region4: #{residual_block.1} parent=0 // pred_region
    _
  $region5: #{residual_block.1} parent=0 // pred_fallthru
    _
  // Predicated region
  $region6: #{residual_block.1} parent=0 // pred_check
    _
  $region7: #{residual_block.1} parent=0 // pred_check_branch
    %20 = sbr.rel (0) target = $region9
  $region8: #{residual_block.1} parent=0 // pred_region
    _
  $region9: #{residual_block.1} parent=0 // pred_fallthru
    _
  // Predicated region
  $region10: #{residual_block.1} parent=0 // pred_check
    _
  $region11: #{residual_block.1} parent=0 // pred_check_branch
    %22 = sbr.rel (0) target = $region13
  $region12: #{residual_block.1} parent=0 // pred_region
    _
  $region13: #{residual_block.1} parent=0 // pred_fallthru
    _
  // Predicated region
  $region14: #{residual_block.1} parent=0 // pred_check
    _
  $region15: #{residual_block.1} parent=0 // pred_check_branch
    %24 = sbr.rel (0) target = $region17
  $region16: #{residual_block.1} parent=0 // pred_region
    _
  $region17: #{residual_block.1} parent=0 // pred_fallthru
    _
  // Predicated region
  $region18: #{residual_block.1} parent=0 // pred_check
    _
  $region19: #{residual_block.1} parent=0 // pred_check_branch
    %26 = sbr.rel (0) target = $region21
  $region20: #{residual_block.1} parent=0 // pred_region
    _
  $region21: #{residual_block.1} parent=0 // pred_fallthru
    _
  // Predicated region
  $region22: #{residual_block.1} parent=0 // pred_check
    _
  $region23: #{residual_block.1} parent=0 // pred_check_branch
    %28 = sbr.rel (0) target = $region25
  $region24: #{residual_block.1} parent=0 // pred_region
    _
  $region25: #{residual_block.1} parent=0 // pred_fallthru
    _
  // Predicated region
  $region26: #{residual_block.1} parent=0 // pred_check
    _
  $region27: #{residual_block.1} parent=0 // pred_check_branch
    %30 = sbr.rel (0) target = $region29
  $region28: #{residual_block.1} parent=0 // pred_region
    _
  $region29: #{residual_block.1} parent=0 // pred_fallthru
    _
  // Predicated region
  $region30: #{residual_block.1} parent=0 // pred_check
    _
  $region31: #{residual_block.1} parent=0 // pred_check_branch
    %32 = sbr.rel (0) target = $region33
  $region32: #{residual_block.1} parent=0 // pred_region
    _
  $region33: #{residual_block.1} parent=0 // pred_fallthru
    _
  // Predicated region
  $region34: #{residual_block.1} parent=0 // pred_check
    _
  $region35: #{residual_block.1} parent=0 // pred_check_branch
    %34 = sbr.rel (0) target = $region37
  $region36: #{residual_block.1} parent=0 // pred_region
    _
  $region37: #{residual_block.1} parent=0 // pred_fallthru
    _
  // Predicated region
  $region38: #{residual_block.1} parent=0 // pred_check
    _
  $region39: #{residual_block.1} parent=0 // pred_check_branch
    %36 = sbr.rel (0) target = $region41
  $region40: #{residual_block.1} parent=0 // pred_region
    _
  $region41: #{residual_block.1} parent=0 // pred_fallthru
    _
  // Predicated region
  $region42: #{residual_block.1} parent=0 // pred_check
    _
  $region43: #{residual_block.1} parent=0 // pred_check_branch
    %38 = sbr.rel (0) target = $region45
  $region44: #{residual_block.1} parent=0 // pred_region
    _
  $region45: #{residual_block.1} parent=0 // pred_fallthru
    _
  // Predicated region
  $region46: #{residual_block.1} parent=0 // pred_check
    _
  $region47: #{residual_block.1} parent=0 // pred_check_branch
    %40 = sbr.rel (0) target = $region49
  $region48: #{residual_block.1} parent=0 // pred_region
    _
  $region49: #{residual_block.1} parent=0 // pred_fallthru
    _
  %v41 = vld [vmem:[%s0] sm:$0xff]
  %v42 = vld [vmem:[%s0 + $0x8] sm:$0xff]
  %v43 = vld [vmem:[%s0 + $0x10] sm:$0xff]
  %v44 = vld [vmem:[%s0 + $0x18] sm:$0xff]
  %v45 = vld [vmem:[%s1] sm:$0xff]
  %v46 = vld [vmem:[%s1 + $0x8] sm:$0xff]
  %v47 = vld [vmem:[%s1 + $0x10] sm:$0xff]
  %v48 = vld [vmem:[%s1 + $0x18] sm:$0xff]
  %v49 = vld [vmem:[%s1 + $0x20] sm:$0xff]
  %v50 = vld [vmem:[%s1 + $0x28] sm:$0xff]
  %v51 = vld [vmem:[%s1 + $0x30] sm:$0xff]
  %v52 = vld [vmem:[%s1 + $0x38] sm:$0xff]
  %v53 = vld [vmem:[%s2] sm:$0x1]
  %v54 = vld [vmem:[%s3] sm:$0x1]
  %vm55 = vcmask 523264
  %v57 = vsel %vm55, %v41, 0
  %v60 = vsel %vm55, %v42, 0
  %v63 = vsel %vm55, %v43, 0
  %v66 = vsel %vm55, %v44, 0
  %68 = vmatprep.subr.mxu0 0.0
  %69 = vmatpush1.msra.mxu0 %v45
  %70 = vmatprep.subr.mxu0 0.0
  %71 = vmatpush1.msra.mxu0 %v46
  %72 = vmatprep.subr.mxu0 0.0
  %73 = vmatpush1.msra.mxu0 %v47
  %74 = vmatprep.subr.mxu0 0.0
  %75 = vmatpush1.msra.mxu0 %v48
  %76 = vmatprep.subr.mxu0 0.0
  %77 = vmatpush1.msra.mxu0 %v49
  %78 = vmatprep.subr.mxu0 0.0
  %79 = vmatpush1.msra.mxu0 %v50
  %80 = vmatprep.subr.mxu0 0.0
  %81 = vmatpush1.msra.mxu0 %v51
  %82 = vmatprep.subr.mxu0 0.0
  %83 = vmatpush1.msra.mxu0 %v52
  %84 = vmatprep.subr.mxu0 0.0
  %85 = vmatpush1.msra.mxu0 0.0
  %86 = vmatprep.subr.mxu0 0.0
  %87 = vmatpush1.msra.mxu0 0.0
  %88 = vmatprep.subr.mxu0 0.0
  %89 = vmatpush1.msra.mxu0 0.0
  %90 = vmatprep.subr.mxu0 0.0
  %91 = vmatpush1.msra.mxu0 0.0
  %92 = vmatprep.subr.mxu0 0.0
  %93 = vmatpush1.msra.mxu0 0.0
  %94 = vmatprep.subr.mxu0 0.0
  %95 = vmatpush1.msra.mxu0 0.0
  %96 = vmatprep.subr.mxu0 0.0
  %97 = vmatpush1.msra.mxu0 0.0
  %98 = vmatprep.subr.mxu0 0.0
  %99 = vmatpush1.msra.mxu0 0.0
  %100 = vmatprep.subr.mxu0 0.0
  %101 = vmatpush1.msra.mxu0 0.0
  %102 = vmatprep.subr.mxu0 0.0
  %103 = vmatpush1.msra.mxu0 0.0
  %104 = vmatprep.subr.mxu0 0.0
  %105 = vmatpush1.msra.mxu0 0.0
  %106 = vmatprep.subr.mxu0 0.0
  %107 = vmatpush1.msra.mxu0 0.0
  %108 = vmatprep.subr.mxu0 0.0
  %109 = vmatpush1.msra.mxu0 0.0
  %110 = vmatprep.subr.mxu0 0.0
  %111 = vmatpush1.msra.mxu0 0.0
  %112 = vmatprep.subr.mxu0 0.0
  %113 = vmatpush1.msra.mxu0 0.0
  %114 = vmatprep.subr.mxu0 0.0
  %115 = vmatpush1.msra.mxu0 0.0
  %116 = vmatprep.subr.mxu0 0.0
  %117 = vmatpush1.msra.mxu0 0.0
  %118 = vmatprep.subr.mxu0 0.0
  %119 = vmatpush1.msra.mxu0 0.0
  %120 = vmatprep.subr.mxu0 0.0
  %121 = vmatpush1.msra.mxu0 0.0
  %122 = vmatprep.subr.mxu0 0.0
  %123 = vmatpush1.msra.mxu0 0.0
  %124 = vmatprep.subr.mxu0 0.0
  %125 = vmatpush1.msra.mxu0 0.0
  %126 = vmatprep.subr.mxu0 0.0
  %127 = vmatpush1.msra.mxu0 0.0
  %128 = vmatprep.subr.mxu0 0.0
  %129 = vmatpush1.msra.mxu0 0.0
  %130 = vmatprep.subr.mxu0 0.0
  %131 = vmatpush1.msra.mxu0 0.0
  %132 = vmatprep.mubr.f32.mxu0 0.0
  %133 = vmatmul.mubr.f32.gmra.mrb[0].mxu0 %v57
  %v134 = vpop.f32.mrb[0].mxu0
  %v135 = vadd.f32 0.0, %v134
  %v136 = vpop.f32.mrb[0].mxu0
  %137 = vmatprep.mubr.f32.mxu0 0.0
  %138 = vmatmul.mubr.f32.gmra.mrb[0].mxu0 %v60
  %v139 = vpop.f32.mrb[0].mxu0
  %v140 = vadd.f32 0.0, %v139
  %v141 = vpop.f32.mrb[0].mxu0
  %142 = vmatprep.mubr.f32.mxu0 0.0
  %143 = vmatmul.mubr.f32.gmra.mrb[0].mxu0 %v63
  %v144 = vpop.f32.mrb[0].mxu0
  %v145 = vadd.f32 0.0, %v144
  %v146 = vpop.f32.mrb[0].mxu0
  %147 = vmatprep.mubr.f32.mxu0 0.0
  %148 = vmatmul.mubr.f32.gmra.mrb[0].mxu0 %v66
  %v149 = vpop.f32.mrb[0].mxu0
  %v150 = vadd.f32 0.0, %v149
  %v151 = vpop.f32.mrb[0].mxu0
  %152 = vdwg.mxu0
  %v153 = vsel %vm55, %v135, 0.0
  %v154 = vsel %vm55, %v140, 0.0
  %v155 = vadd.f32 %v153, %v154
  %v156 = vsel %vm55, %v145, 0.0
  %v157 = vadd.f32 %v155, %v156
  %v158 = vsel %vm55, %v150, 0.0
  %v159 = vadd.f32 %v157, %v158
  %v160 = vrot.slane %v159, 4
  %v161 = vadd.f32 %v159, %v160
  %v162 = vrot.slane %v161, 2
  %v163 = vadd.f32 %v161, %v162
  %v164 = vrot.slane %v163, 1
  %v165 = vadd.f32 %v163, %v164
  %v166 = vsub.f32 %v41, %v165
  %v167 = vsub.f32 %v42, %v165
  %v168 = vsub.f32 %v43, %v165
  %v169 = vsub.f32 %v44, %v165
  %v170 = vmul.f32 %v166, %v166
  %v171 = vmul.f32 %v167, %v167
  %v172 = vmul.f32 %v168, %v168
  %v173 = vmul.f32 %v169, %v169
  %v175 = vsel %vm55, %v170, 0
  %v178 = vsel %vm55, %v171, 0
  %v181 = vsel %vm55, %v172, 0
  %v184 = vsel %vm55, %v173, 0
  %186 = vmatprep.subr.mxu0 0.0
  %187 = vmatpush1.msra.mxu0 %v45
  %188 = vmatprep.subr.mxu0 0.0
  %189 = vmatpush1.msra.mxu0 %v46
  %190 = vmatprep.subr.mxu0 0.0
  %191 = vmatpush1.msra.mxu0 %v47
  %192 = vmatprep.subr.mxu0 0.0
  %193 = vmatpush1.msra.mxu0 %v48
  %194 = vmatprep.subr.mxu0 0.0
  %195 = vmatpush1.msra.mxu0 %v49
  %196 = vmatprep.subr.mxu0 0.0
  %197 = vmatpush1.msra.mxu0 %v50
  %198 = vmatprep.subr.mxu0 0.0
  %199 = vmatpush1.msra.mxu0 %v51
  %200 = vmatprep.subr.mxu0 0.0
  %201 = vmatpush1.msra.mxu0 %v52
  %202 = vmatprep.subr.mxu0 0.0
  %203 = vmatpush1.msra.mxu0 0.0
  %204 = vmatprep.subr.mxu0 0.0
  %205 = vmatpush1.msra.mxu0 0.0
  %206 = vmatprep.subr.mxu0 0.0
  %207 = vmatpush1.msra.mxu0 0.0
  %208 = vmatprep.subr.mxu0 0.0
  %209 = vmatpush1.msra.mxu0 0.0
  %210 = vmatprep.subr.mxu0 0.0
  %211 = vmatpush1.msra.mxu0 0.0
  %212 = vmatprep.subr.mxu0 0.0
  %213 = vmatpush1.msra.mxu0 0.0
  %214 = vmatprep.subr.mxu0 0.0
  %215 = vmatpush1.msra.mxu0 0.0
  %216 = vmatprep.subr.mxu0 0.0
  %217 = vmatpush1.msra.mxu0 0.0
  %218 = vmatprep.subr.mxu0 0.0
  %219 = vmatpush1.msra.mxu0 0.0
  %220 = vmatprep.subr.mxu0 0.0
  %221 = vmatpush1.msra.mxu0 0.0
  %222 = vmatprep.subr.mxu0 0.0
  %223 = vmatpush1.msra.mxu0 0.0
  %224 = vmatprep.subr.mxu0 0.0
  %225 = vmatpush1.msra.mxu0 0.0
  %226 = vmatprep.subr.mxu0 0.0
  %227 = vmatpush1.msra.mxu0 0.0
  %228 = vmatprep.subr.mxu0 0.0
  %229 = vmatpush1.msra.mxu0 0.0
  %230 = vmatprep.subr.mxu0 0.0
  %231 = vmatpush1.msra.mxu0 0.0
  %232 = vmatprep.subr.mxu0 0.0
  %233 = vmatpush1.msra.mxu0 0.0
  %234 = vmatprep.subr.mxu0 0.0
  %235 = vmatpush1.msra.mxu0 0.0
  %236 = vmatprep.subr.mxu0 0.0
  %237 = vmatpush1.msra.mxu0 0.0
  %238 = vmatprep.subr.mxu0 0.0
  %239 = vmatpush1.msra.mxu0 0.0
  %240 = vmatprep.subr.mxu0 0.0
  %241 = vmatpush1.msra.mxu0 0.0
  %242 = vmatprep.subr.mxu0 0.0
  %243 = vmatpush1.msra.mxu0 0.0
  %244 = vmatprep.subr.mxu0 0.0
  %245 = vmatpush1.msra.mxu0 0.0
  %246 = vmatprep.subr.mxu0 0.0
  %247 = vmatpush1.msra.mxu0 0.0
  %248 = vmatprep.subr.mxu0 0.0
  %249 = vmatpush1.msra.mxu0 0.0
  %250 = vmatprep.mubr.f32.mxu0 0.0
  %251 = vmatmul.mubr.f32.gmra.mrb[0].mxu0 %v175
  %v252 = vpop.f32.mrb[0].mxu0
  %v253 = vadd.f32 0.0, %v252
  %v254 = vpop.f32.mrb[0].mxu0
  %255 = vmatprep.mubr.f32.mxu0 0.0
  %256 = vmatmul.mubr.f32.gmra.mrb[0].mxu0 %v178
  %v257 = vpop.f32.mrb[0].mxu0
  %v258 = vadd.f32 0.0, %v257
  %v259 = vpop.f32.mrb[0].mxu0
  %260 = vmatprep.mubr.f32.mxu0 0.0
  %261 = vmatmul.mubr.f32.gmra.mrb[0].mxu0 %v181
  %v262 = vpop.f32.mrb[0].mxu0
  %v263 = vadd.f32 0.0, %v262
  %v264 = vpop.f32.mrb[0].mxu0
  %265 = vmatprep.mubr.f32.mxu0 0.0
  %266 = vmatmul.mubr.f32.gmra.mrb[0].mxu0 %v184
  %v267 = vpop.f32.mrb[0].mxu0
  %v268 = vadd.f32 0.0, %v267
  %v269 = vpop.f32.mrb[0].mxu0
  %270 = vdwg.mxu0
  %v271 = vsel %vm55, %v253, 0.0
  %v272 = vsel %vm55, %v258, 0.0
  %v273 = vadd.f32 %v271, %v272
  %v274 = vsel %vm55, %v263, 0.0
  %v275 = vadd.f32 %v273, %v274
  %v276 = vsel %vm55, %v268, 0.0
  %v277 = vadd.f32 %v275, %v276
  %v278 = vrot.slane %v277, 4
  %v279 = vadd.f32 %v277, %v278
  %v280 = vrot.slane %v279, 2
  %v281 = vadd.f32 %v279, %v280
  %v282 = vrot.slane %v281, 1
  %v283 = vadd.f32 %v281, %v282
  %v284 = vadd.f32 %v283, 1e-05
  %v285 = vrsqrt.pop %v284
  %v286 = vmul.f32 %v166, %v285
  %v287 = vmul.f32 %v167, %v285
  %v288 = vmul.f32 %v168, %v285
  %v289 = vmul.f32 %v169, %v285
  %v291 = vlaneseq
  %v292 = vshrl.u32 %v291, 7
  %v293 = vsub.s32 0, %v292
  %v294 = vrot.slane %v53, %v293
  %v296 = vmul.f32 %v286, %v294
  %v297 = vmul.f32 %v287, %v294
  %v298 = vmul.f32 %v288, %v294
  %v299 = vmul.f32 %v289, %v294
  %v301 = vlaneseq
  %v302 = vshrl.u32 %v301, 7
  %v303 = vsub.s32 0, %v302
  %v304 = vrot.slane %v54, %v303
  %v306 = vadd.f32 %v296, %v304
  %v307 = vadd.f32 %v297, %v304
  %v308 = vadd.f32 %v298, %v304
  %v309 = vadd.f32 %v299, %v304
  %v310 = vmax.f32 %v306, 0.0
  %v311 = vmax.f32 %v307, 0.0
  %v312 = vmax.f32 %v308, 0.0
  %v313 = vmax.f32 %v309, 0.0
  %v314 = vld [vmem:[%s4] sm:$0xff]
  %v315 = vld [vmem:[%s4 + $0x8] sm:$0xff]
  %v316 = vld [vmem:[%s4 + $0x10] sm:$0xff]
  %v317 = vld [vmem:[%s4 + $0x18] sm:$0xff]
  %vm318 = vcmask 261120
  %v320 = vsel %vm318, %v314, 0
  %v323 = vsel %vm318, %v315, 0
  %v326 = vsel %vm318, %v316, 0
  %v329 = vsel %vm318, %v317, 0
  %331 = vmatprep.subr.mxu0 0.0
  %332 = vmatpush1.msra.mxu0 %v310
  %333 = vmatprep.subr.mxu0 0.0
  %334 = vmatpush1.msra.mxu0 %v311
  %335 = vmatprep.subr.mxu0 0.0
  %336 = vmatpush1.msra.mxu0 %v312
  %337 = vmatprep.subr.mxu0 0.0
  %338 = vmatpush1.msra.mxu0 %v313
  %339 = vmatprep.subr.mxu0 0.0
  %340 = vmatpush1.msra.mxu0 0.0
  %341 = vmatprep.subr.mxu0 0.0
  %342 = vmatpush1.msra.mxu0 0.0
  %343 = vmatprep.subr.mxu0 0.0
  %344 = vmatpush1.msra.mxu0 0.0
  %345 = vmatprep.subr.mxu0 0.0
  %346 = vmatpush1.msra.mxu0 0.0
  %347 = vmatprep.subr.mxu0 0.0
  %348 = vmatpush1.msra.mxu0 0.0
  %349 = vmatprep.subr.mxu0 0.0
  %350 = vmatpush1.msra.mxu0 0.0
  %351 = vmatprep.subr.mxu0 0.0
  %352 = vmatpush1.msra.mxu0 0.0
  %353 = vmatprep.subr.mxu0 0.0
  %354 = vmatpush1.msra.mxu0 0.0
  %355 = vmatprep.subr.mxu0 0.0
  %356 = vmatpush1.msra.mxu0 0.0
  %357 = vmatprep.subr.mxu0 0.0
  %358 = vmatpush1.msra.mxu0 0.0
  %359 = vmatprep.subr.mxu0 0.0
  %360 = vmatpush1.msra.mxu0 0.0
  %361 = vmatprep.subr.mxu0 0.0
  %362 = vmatpush1.msra.mxu0 0.0
  %363 = vmatprep.subr.mxu0 0.0
  %364 = vmatpush1.msra.mxu0 0.0
  %365 = vmatprep.subr.mxu0 0.0
  %366 = vmatpush1.msra.mxu0 0.0
  %367 = vmatprep.subr.mxu0 0.0
  %368 = vmatpush1.msra.mxu0 0.0
  %369 = vmatprep.subr.mxu0 0.0
  %370 = vmatpush1.msra.mxu0 0.0
  %371 = vmatprep.subr.mxu0 0.0
  %372 = vmatpush1.msra.mxu0 0.0
  %373 = vmatprep.subr.mxu0 0.0
  %374 = vmatpush1.msra.mxu0 0.0
  %375 = vmatprep.subr.mxu0 0.0
  %376 = vmatpush1.msra.mxu0 0.0
  %377 = vmatprep.subr.mxu0 0.0
  %378 = vmatpush1.msra.mxu0 0.0
  %379 = vmatprep.subr.mxu0 0.0
  %380 = vmatpush1.msra.mxu0 0.0
  %381 = vmatprep.subr.mxu0 0.0
  %382 = vmatpush1.msra.mxu0 0.0
  %383 = vmatprep.subr.mxu0 0.0
  %384 = vmatpush1.msra.mxu0 0.0
  %385 = vmatprep.subr.mxu0 0.0
  %386 = vmatpush1.msra.mxu0 0.0
  %387 = vmatprep.subr.mxu0 0.0
  %388 = vmatpush1.msra.mxu0 0.0
  %389 = vmatprep.subr.mxu0 0.0
  %390 = vmatpush1.msra.mxu0 0.0
  %391 = vmatprep.subr.mxu0 0.0
  %392 = vmatpush1.msra.mxu0 0.0
  %393 = vmatprep.subr.mxu0 0.0
  %394 = vmatpush1.msra.mxu0 0.0
  %395 = vmatprep.mubr.f32.mxu0 0.0
  %396 = vmatmul.mubr.f32.gmra.mrb[0].mxu0 %v320
  %v397 = vpop.f32.mrb[0].mxu0
  %v398 = vadd.f32 0.0, %v397
  %v399 = vpop.f32.mrb[0].mxu0
  %400 = vmatprep.mubr.f32.mxu0 0.0
  %401 = vmatmul.mubr.f32.gmra.mrb[0].mxu0 %v323
  %v402 = vpop.f32.mrb[0].mxu0
  %v403 = vadd.f32 0.0, %v402
  %v404 = vpop.f32.mrb[0].mxu0
  %405 = vmatprep.mubr.f32.mxu0 0.0
  %406 = vmatmul.mubr.f32.gmra.mrb[0].mxu0 %v326
  %v407 = vpop.f32.mrb[0].mxu0
  %v408 = vadd.f32 0.0, %v407
  %v409 = vpop.f32.mrb[0].mxu0
  %410 = vmatprep.mubr.f32.mxu0 0.0
  %411 = vmatmul.mubr.f32.gmra.mrb[0].mxu0 %v329
  %v412 = vpop.f32.mrb[0].mxu0
  %v413 = vadd.f32 0.0, %v412
  %v414 = vpop.f32.mrb[0].mxu0
  %415 = vdwg.mxu0
  %v416 = vld [vmem:[%s5] sm:$0xff]
  %v417 = vld [vmem:[%s5 + $0x8] sm:$0xff]
  %v418 = vld [vmem:[%s5 + $0x10] sm:$0xff]
  %v419 = vld [vmem:[%s5 + $0x18] sm:$0xff]
  %v421 = vsel %vm318, %v416, 0
  %v424 = vsel %vm318, %v417, 0
  %v427 = vsel %vm318, %v418, 0
  %v430 = vsel %vm318, %v419, 0
  %432 = vmatprep.subr.mxu0 0.0
  %433 = vmatpush1.msra.mxu0 %v310
  %434 = vmatprep.subr.mxu0 0.0
  %435 = vmatpush1.msra.mxu0 %v311
  %436 = vmatprep.subr.mxu0 0.0
  %437 = vmatpush1.msra.mxu0 %v312
  %438 = vmatprep.subr.mxu0 0.0
  %439 = vmatpush1.msra.mxu0 %v313
  %440 = vmatprep.subr.mxu0 0.0
  %441 = vmatpush1.msra.mxu0 0.0
  %442 = vmatprep.subr.mxu0 0.0
  %443 = vmatpush1.msra.mxu0 0.0
  %444 = vmatprep.subr.mxu0 0.0
  %445 = vmatpush1.msra.mxu0 0.0
  %446 = vmatprep.subr.mxu0 0.0
  %447 = vmatpush1.msra.mxu0 0.0
  %448 = vmatprep.subr.mxu0 0.0
  %449 = vmatpush1.msra.mxu0 0.0
  %450 = vmatprep.subr.mxu0 0.0
  %451 = vmatpush1.msra.mxu0 0.0
  %452 = vmatprep.subr.mxu0 0.0
  %453 = vmatpush1.msra.mxu0 0.0
  %454 = vmatprep.subr.mxu0 0.0
  %455 = vmatpush1.msra.mxu0 0.0
  %456 = vmatprep.subr.mxu0 0.0
  %457 = vmatpush1.msra.mxu0 0.0
  %458 = vmatprep.subr.mxu0 0.0
  %459 = vmatpush1.msra.mxu0 0.0
  %460 = vmatprep.subr.mxu0 0.0
  %461 = vmatpush1.msra.mxu0 0.0
  %462 = vmatprep.subr.mxu0 0.0
  %463 = vmatpush1.msra.mxu0 0.0
  %464 = vmatprep.subr.mxu0 0.0
  %465 = vmatpush1.msra.mxu0 0.0
  %466 = vmatprep.subr.mxu0 0.0
  %467 = vmatpush1.msra.mxu0 0.0
  %468 = vmatprep.subr.mxu0 0.0
  %469 = vmatpush1.msra.mxu0 0.0
  %470 = vmatprep.subr.mxu0 0.0
  %471 = vmatpush1.msra.mxu0 0.0
  %472 = vmatprep.subr.mxu0 0.0
  %473 = vmatpush1.msra.mxu0 0.0
  %474 = vmatprep.subr.mxu0 0.0
  %475 = vmatpush1.msra.mxu0 0.0
  %476 = vmatprep.subr.mxu0 0.0
  %477 = vmatpush1.msra.mxu0 0.0
  %478 = vmatprep.subr.mxu0 0.0
  %479 = vmatpush1.msra.mxu0 0.0
  %480 = vmatprep.subr.mxu0 0.0
  %481 = vmatpush1.msra.mxu0 0.0
  %482 = vmatprep.subr.mxu0 0.0
  %483 = vmatpush1.msra.mxu0 0.0
  %484 = vmatprep.subr.mxu0 0.0
  %485 = vmatpush1.msra.mxu0 0.0
  %486 = vmatprep.subr.mxu0 0.0
  %487 = vmatpush1.msra.mxu0 0.0
  %488 = vmatprep.subr.mxu0 0.0
  %489 = vmatpush1.msra.mxu0 0.0
  %490 = vmatprep.subr.mxu0 0.0
  %491 = vmatpush1.msra.mxu0 0.0
  %492 = vmatprep.subr.mxu0 0.0
  %493 = vmatpush1.msra.mxu0 0.0
  %494 = vmatprep.subr.mxu0 0.0
  %495 = vmatpush1.msra.mxu0 0.0
  %496 = vmatprep.mubr.f32.mxu0 0.0
  %497 = vmatmul.mubr.f32.gmra.mrb[0].mxu0 %v421
  %v498 = vpop.f32.mrb[0].mxu0
  %v499 = vadd.f32 0.0, %v498
  %v500 = vpop.f32.mrb[0].mxu0
  %501 = vmatprep.mubr.f32.mxu0 0.0
  %502 = vmatmul.mubr.f32.gmra.mrb[0].mxu0 %v424
  %v503 = vpop.f32.mrb[0].mxu0
  %v504 = vadd.f32 0.0, %v503
  %v505 = vpop.f32.mrb[0].mxu0
  %506 = vmatprep.mubr.f32.mxu0 0.0
  %507 = vmatmul.mubr.f32.gmra.mrb[0].mxu0 %v427
  %v508 = vpop.f32.mrb[0].mxu0
  %v509 = vadd.f32 0.0, %v508
  %v510 = vpop.f32.mrb[0].mxu0
  %511 = vmatprep.mubr.f32.mxu0 0.0
  %512 = vmatmul.mubr.f32.gmra.mrb[0].mxu0 %v430
  %v513 = vpop.f32.mrb[0].mxu0
  %v514 = vadd.f32 0.0, %v513
  %v515 = vpop.f32.mrb[0].mxu0
  %516 = vdwg.mxu0
  %v517 = vld [vmem:[%s6] sm:$0xff]
  %v518 = vld [vmem:[%s6 + $0x8] sm:$0xff]
  %v519 = vld [vmem:[%s6 + $0x10] sm:$0xff]
  %v520 = vld [vmem:[%s6 + $0x18] sm:$0xff]
  %v521 = vld [vmem:[%s6 + $0x20] sm:$0xff]
  %v522 = vld [vmem:[%s6 + $0x28] sm:$0xff]
  %v523 = vld [vmem:[%s6 + $0x30] sm:$0xff]
  %v524 = vld [vmem:[%s6 + $0x38] sm:$0xff]
  %v525 = vld [vmem:[%s6 + $0x40] sm:$0xff]
  %v526 = vld [vmem:[%s6 + $0x48] sm:$0xff]
  %v527 = vld [vmem:[%s6 + $0x50] sm:$0xff]
  %v528 = vld [vmem:[%s6 + $0x58] sm:$0xff]
  %v529 = vld [vmem:[%s6 + $0x60] sm:$0xff]
  %v530 = vld [vmem:[%s6 + $0x68] sm:$0xff]
  %v531 = vld [vmem:[%s6 + $0x70] sm:$0xff]
  %v532 = vld [vmem:[%s6 + $0x78] sm:$0xff]
  %v534 = vsel %vm55, %v310, 0
  %v537 = vsel %vm55, %v311, 0
  %v540 = vsel %vm55, %v312, 0
  %v543 = vsel %vm55, %v313, 0
  %545 = vmatprep.subr.mxu0 0.0
  %546 = vmatpush1.msra.mxu0 %v525
  %547 = vmatprep.subr.mxu0 0.0
  %548 = vmatpush1.msra.mxu0 %v526
  %549 = vmatprep.subr.mxu0 0.0
  %550 = vmatpush1.msra.mxu0 %v527
  %551 = vmatprep.subr.mxu0 0.0
  %552 = vmatpush1.msra.mxu0 %v528
  %553 = vmatprep.subr.mxu0 0.0
  %554 = vmatpush1.msra.mxu0 %v529
  %555 = vmatprep.subr.mxu0 0.0
  %556 = vmatpush1.msra.mxu0 %v530
  %557 = vmatprep.subr.mxu0 0.0
  %558 = vmatpush1.msra.mxu0 %v531
  %559 = vmatprep.subr.mxu0 0.0
  %560 = vmatpush1.msra.mxu0 %v532
  %561 = vmatprep.subr.mxu0 0.0
  %562 = vmatpush1.msra.mxu0 0.0
  %563 = vmatprep.subr.mxu0 0.0
  %564 = vmatpush1.msra.mxu0 0.0
  %565 = vmatprep.subr.mxu0 0.0
  %566 = vmatpush1.msra.mxu0 0.0
  %567 = vmatprep.subr.mxu0 0.0
  %568 = vmatpush1.msra.mxu0 0.0
  %569 = vmatprep.subr.mxu0 0.0
  %570 = vmatpush1.msra.mxu0 0.0
  %571 = vmatprep.subr.mxu0 0.0
  %572 = vmatpush1.msra.mxu0 0.0
  %573 = vmatprep.subr.mxu0 0.0
  %574 = vmatpush1.msra.mxu0 0.0
  %575 = vmatprep.subr.mxu0 0.0
  %576 = vmatpush1.msra.mxu0 0.0
  %577 = vmatprep.subr.mxu0 0.0
  %578 = vmatpush1.msra.mxu0 0.0
  %579 = vmatprep.subr.mxu0 0.0
  %580 = vmatpush1.msra.mxu0 0.0
  %581 = vmatprep.subr.mxu0 0.0
  %582 = vmatpush1.msra.mxu0 0.0
  %583 = vmatprep.subr.mxu0 0.0
  %584 = vmatpush1.msra.mxu0 0.0
  %585 = vmatprep.subr.mxu0 0.0
  %586 = vmatpush1.msra.mxu0 0.0
  %587 = vmatprep.subr.mxu0 0.0
  %588 = vmatpush1.msra.mxu0 0.0
  %589 = vmatprep.subr.mxu0 0.0
  %590 = vmatpush1.msra.mxu0 0.0
  %591 = vmatprep.subr.mxu0 0.0
  %592 = vmatpush1.msra.mxu0 0.0
  %593 = vmatprep.subr.mxu0 0.0
  %594 = vmatpush1.msra.mxu0 0.0
  %595 = vmatprep.subr.mxu0 0.0
  %596 = vmatpush1.msra.mxu0 0.0
  %597 = vmatprep.subr.mxu0 0.0
  %598 = vmatpush1.msra.mxu0 0.0
  %599 = vmatprep.subr.mxu0 0.0
  %600 = vmatpush1.msra.mxu0 0.0
  %601 = vmatprep.subr.mxu0 0.0
  %602 = vmatpush1.msra.mxu0 0.0
  %603 = vmatprep.subr.mxu0 0.0
  %604 = vmatpush1.msra.mxu0 0.0
  %605 = vmatprep.subr.mxu0 0.0
  %606 = vmatpush1.msra.mxu0 0.0
  %607 = vmatprep.subr.mxu0 0.0
  %608 = vmatpush1.msra.mxu0 0.0
  %609 = vmatprep.mubr.f32.mxu0 0.0
  %610 = vmatmul.mubr.f32.gmra.mrb[0].mxu0 %v534
  %v611 = vpop.f32.mrb[0].mxu0
  %v612 = vadd.f32 0.0, %v611
  %v613 = vpop.f32.mrb[0].mxu0
  %614 = vmatprep.mubr.f32.mxu0 0.0
  %615 = vmatmul.mubr.f32.gmra.mrb[0].mxu0 %v537
  %v616 = vpop.f32.mrb[0].mxu0
  %v617 = vadd.f32 0.0, %v616
  %v618 = vpop.f32.mrb[0].mxu0
  %619 = vmatprep.mubr.f32.mxu0 0.0
  %620 = vmatmul.mubr.f32.gmra.mrb[0].mxu0 %v540
  %v621 = vpop.f32.mrb[0].mxu0
  %v622 = vadd.f32 0.0, %v621
  %v623 = vpop.f32.mrb[0].mxu0
  %624 = vmatprep.mubr.f32.mxu0 0.0
  %625 = vmatmul.mubr.f32.gmra.mrb[0].mxu0 %v543
  %v626 = vpop.f32.mrb[0].mxu0
  %v627 = vadd.f32 0.0, %v626
  %v628 = vpop.f32.mrb[0].mxu0
  %629 = vdwg.mxu0
  %v631 = vsel %vm55, %v398, 0
  %v634 = vsel %vm55, %v403, 0
  %v637 = vsel %vm55, %v408, 0
  %v640 = vsel %vm55, %v413, 0
  %642 = vmatprep.subr.mxu0 0.0
  %643 = vmatpush1.msra.mxu0 %v517
  %644 = vmatprep.subr.mxu0 0.0
  %645 = vmatpush1.msra.mxu0 %v518
  %646 = vmatprep.subr.mxu0 0.0
  %647 = vmatpush1.msra.mxu0 %v519
  %648 = vmatprep.subr.mxu0 0.0
  %649 = vmatpush1.msra.mxu0 %v520
  %650 = vmatprep.subr.mxu0 0.0
  %651 = vmatpush1.msra.mxu0 %v521
  %652 = vmatprep.subr.mxu0 0.0
  %653 = vmatpush1.msra.mxu0 %v522
  %654 = vmatprep.subr.mxu0 0.0
  %655 = vmatpush1.msra.mxu0 %v523
  %656 = vmatprep.subr.mxu0 0.0
  %657 = vmatpush1.msra.mxu0 %v524
  %658 = vmatprep.subr.mxu0 0.0
  %659 = vmatpush1.msra.mxu0 0.0
  %660 = vmatprep.subr.mxu0 0.0
  %661 = vmatpush1.msra.mxu0 0.0
  %662 = vmatprep.subr.mxu0 0.0
  %663 = vmatpush1.msra.mxu0 0.0
  %664 = vmatprep.subr.mxu0 0.0
  %665 = vmatpush1.msra.mxu0 0.0
  %666 = vmatprep.subr.mxu0 0.0
  %667 = vmatpush1.msra.mxu0 0.0
  %668 = vmatprep.subr.mxu0 0.0
  %669 = vmatpush1.msra.mxu0 0.0
  %670 = vmatprep.subr.mxu0 0.0
  %671 = vmatpush1.msra.mxu0 0.0
  %672 = vmatprep.subr.mxu0 0.0
  %673 = vmatpush1.msra.mxu0 0.0
  %674 = vmatprep.subr.mxu0 0.0
  %675 = vmatpush1.msra.mxu0 0.0
  %676 = vmatprep.subr.mxu0 0.0
  %677 = vmatpush1.msra.mxu0 0.0
  %678 = vmatprep.subr.mxu0 0.0
  %679 = vmatpush1.msra.mxu0 0.0
  %680 = vmatprep.subr.mxu0 0.0
  %681 = vmatpush1.msra.mxu0 0.0
  %682 = vmatprep.subr.mxu0 0.0
  %683 = vmatpush1.msra.mxu0 0.0
  %684 = vmatprep.subr.mxu0 0.0
  %685 = vmatpush1.msra.mxu0 0.0
  %686 = vmatprep.subr.mxu0 0.0
  %687 = vmatpush1.msra.mxu0 0.0
  %688 = vmatprep.subr.mxu0 0.0
  %689 = vmatpush1.msra.mxu0 0.0
  %690 = vmatprep.subr.mxu0 0.0
  %691 = vmatpush1.msra.mxu0 0.0
  %692 = vmatprep.subr.mxu0 0.0
  %693 = vmatpush1.msra.mxu0 0.0
  %694 = vmatprep.subr.mxu0 0.0
  %695 = vmatpush1.msra.mxu0 0.0
  %696 = vmatprep.subr.mxu0 0.0
  %697 = vmatpush1.msra.mxu0 0.0
  %698 = vmatprep.subr.mxu0 0.0
  %699 = vmatpush1.msra.mxu0 0.0
  %700 = vmatprep.subr.mxu0 0.0
  %701 = vmatpush1.msra.mxu0 0.0
  %702 = vmatprep.subr.mxu0 0.0
  %703 = vmatpush1.msra.mxu0 0.0
  %704 = vmatprep.subr.mxu0 0.0
  %705 = vmatpush1.msra.mxu0 0.0
  %706 = vmatprep.mubr.f32.mxu0 0.0
  %707 = vmatmul.mubr.f32.gmra.mrb[0].mxu0 %v631
  %v708 = vpop.f32.mrb[0].mxu0
  %v709 = vadd.f32 %v612, %v708
  %v710 = vpop.f32.mrb[0].mxu0
  %711 = vmatprep.mubr.f32.mxu0 0.0
  %712 = vmatmul.mubr.f32.gmra.mrb[0].mxu0 %v634
  %v713 = vpop.f32.mrb[0].mxu0
  %v714 = vadd.f32 %v617, %v713
  %v715 = vpop.f32.mrb[0].mxu0
  %716 = vmatprep.mubr.f32.mxu0 0.0
  %717 = vmatmul.mubr.f32.gmra.mrb[0].mxu0 %v637
  %v718 = vpop.f32.mrb[0].mxu0
  %v719 = vadd.f32 %v622, %v718
  %v720 = vpop.f32.mrb[0].mxu0
  %721 = vmatprep.mubr.f32.mxu0 0.0
  %722 = vmatmul.mubr.f32.gmra.mrb[0].mxu0 %v640
  %v723 = vpop.f32.mrb[0].mxu0
  %v724 = vadd.f32 %v627, %v723
  %v725 = vpop.f32.mrb[0].mxu0
  %726 = vdwg.mxu0
  %v727 = vld [vmem:[%s6 + $0x80] sm:$0xff]
  %v728 = vld [vmem:[%s6 + $0x88] sm:$0xff]
  %v729 = vld [vmem:[%s6 + $0x90] sm:$0xff]
  %v730 = vld [vmem:[%s6 + $0x98] sm:$0xff]
  %v731 = vld [vmem:[%s6 + $0xa0] sm:$0xff]
  %v732 = vld [vmem:[%s6 + $0xa8] sm:$0xff]
  %v733 = vld [vmem:[%s6 + $0xb0] sm:$0xff]
  %v734 = vld [vmem:[%s6 + $0xb8] sm:$0xff]
  %v736 = vsel %vm55, %v499, 0
  %v739 = vsel %vm55, %v504, 0
  %v742 = vsel %vm55, %v509, 0
  %v745 = vsel %vm55, %v514, 0
  %747 = vmatprep.subr.mxu0 0.0
  %748 = vmatpush1.msra.mxu0 %v727
  %749 = vmatprep.subr.mxu0 0.0
  %750 = vmatpush1.msra.mxu0 %v728
  %751 = vmatprep.subr.mxu0 0.0
  %752 = vmatpush1.msra.mxu0 %v729
  %753 = vmatprep.subr.mxu0 0.0
  %754 = vmatpush1.msra.mxu0 %v730
  %755 = vmatprep.subr.mxu0 0.0
  %756 = vmatpush1.msra.mxu0 %v731
  %757 = vmatprep.subr.mxu0 0.0
  %758 = vmatpush1.msra.mxu0 %v732
  %759 = vmatprep.subr.mxu0 0.0
  %760 = vmatpush1.msra.mxu0 %v733
  %761 = vmatprep.subr.mxu0 0.0
  %762 = vmatpush1.msra.mxu0 %v734
  %763 = vmatprep.subr.mxu0 0.0
  %764 = vmatpush1.msra.mxu0 0.0
  %765 = vmatprep.subr.mxu0 0.0
  %766 = vmatpush1.msra.mxu0 0.0
  %767 = vmatprep.subr.mxu0 0.0
  %768 = vmatpush1.msra.mxu0 0.0
  %769 = vmatprep.subr.mxu0 0.0
  %770 = vmatpush1.msra.mxu0 0.0
  %771 = vmatprep.subr.mxu0 0.0
  %772 = vmatpush1.msra.mxu0 0.0
  %773 = vmatprep.subr.mxu0 0.0
  %774 = vmatpush1.msra.mxu0 0.0
  %775 = vmatprep.subr.mxu0 0.0
  %776 = vmatpush1.msra.mxu0 0.0
  %777 = vmatprep.subr.mxu0 0.0
  %778 = vmatpush1.msra.mxu0 0.0
  %779 = vmatprep.subr.mxu0 0.0
  %780 = vmatpush1.msra.mxu0 0.0
  %781 = vmatprep.subr.mxu0 0.0
  %782 = vmatpush1.msra.mxu0 0.0
  %783 = vmatprep.subr.mxu0 0.0
  %784 = vmatpush1.msra.mxu0 0.0
  %785 = vmatprep.subr.mxu0 0.0
  %786 = vmatpush1.msra.mxu0 0.0
  %787 = vmatprep.subr.mxu0 0.0
  %788 = vmatpush1.msra.mxu0 0.0
  %789 = vmatprep.subr.mxu0 0.0
  %790 = vmatpush1.msra.mxu0 0.0
  %791 = vmatprep.subr.mxu0 0.0
  %792 = vmatpush1.msra.mxu0 0.0
  %793 = vmatprep.subr.mxu0 0.0
  %794 = vmatpush1.msra.mxu0 0.0
  %795 = vmatprep.subr.mxu0 0.0
  %796 = vmatpush1.msra.mxu0 0.0
  %797 = vmatprep.subr.mxu0 0.0
  %798 = vmatpush1.msra.mxu0 0.0
  %799 = vmatprep.subr.mxu0 0.0
  %800 = vmatpush1.msra.mxu0 0.0
  %801 = vmatprep.subr.mxu0 0.0
  %802 = vmatpush1.msra.mxu0 0.0
  %803 = vmatprep.subr.mxu0 0.0
  %804 = vmatpush1.msra.mxu0 0.0
  %805 = vmatprep.subr.mxu0 0.0
  %806 = vmatpush1.msra.mxu0 0.0
  %807 = vmatprep.subr.mxu0 0.0
  %808 = vmatpush1.msra.mxu0 0.0
  %809 = vmatprep.subr.mxu0 0.0
  %810 = vmatpush1.msra.mxu0 0.0
  %811 = vmatprep.mubr.f32.mxu0 0.0
  %812 = vmatmul.mubr.f32.gmra.mrb[0].mxu0 %v736
  %v813 = vpop.f32.mrb[0].mxu0
  %v814 = vadd.f32 0.0, %v813
  %v815 = vpop.f32.mrb[0].mxu0
  %816 = vmatprep.mubr.f32.mxu0 0.0
  %817 = vmatmul.mubr.f32.gmra.mrb[0].mxu0 %v739
  %v818 = vpop.f32.mrb[0].mxu0
  %v819 = vadd.f32 0.0, %v818
  %v820 = vpop.f32.mrb[0].mxu0
  %821 = vmatprep.mubr.f32.mxu0 0.0
  %822 = vmatmul.mubr.f32.gmra.mrb[0].mxu0 %v742
  %v823 = vpop.f32.mrb[0].mxu0
  %v824 = vadd.f32 0.0, %v823
  %v825 = vpop.f32.mrb[0].mxu0
  %826 = vmatprep.mubr.f32.mxu0 0.0
  %827 = vmatmul.mubr.f32.gmra.mrb[0].mxu0 %v745
  %v828 = vpop.f32.mrb[0].mxu0
  %v829 = vadd.f32 0.0, %v828
  %v830 = vpop.f32.mrb[0].mxu0
  %831 = vdwg.mxu0
  %v832 = vadd.f32 %v709, %v814
  %v833 = vadd.f32 %v714, %v819
  %v834 = vadd.f32 %v719, %v824
  %v835 = vadd.f32 %v724, %v829
  %v836 = vld [vmem:[%s7] sm:$0x1]
  %v838 = vlaneseq
  %v839 = vshrl.u32 %v838, 7
  %v840 = vsub.s32 0, %v839
  %v841 = vrot.slane %v836, %v840
  %v843 = vadd.f32 %v832, %v841
  %v844 = vadd.f32 %v833, %v841
  %v845 = vadd.f32 %v834, %v841
  %v846 = vadd.f32 %v835, %v841
  %v847 = vld [vmem:[%s8] sm:$0x1]
  %v848 = vld [vmem:[%s9] sm:$0x1]
  %v850 = vsel %vm55, %v843, 0
  %v853 = vsel %vm55, %v844, 0
  %v856 = vsel %vm55, %v845, 0
  %v859 = vsel %vm55, %v846, 0
  %861 = vmatprep.subr.mxu0 0.0
  %862 = vmatpush1.msra.mxu0 %v45
  %863 = vmatprep.subr.mxu0 0.0
  %864 = vmatpush1.msra.mxu0 %v46
  %865 = vmatprep.subr.mxu0 0.0
  %866 = vmatpush1.msra.mxu0 %v47
  %867 = vmatprep.subr.mxu0 0.0
  %868 = vmatpush1.msra.mxu0 %v48
  %869 = vmatprep.subr.mxu0 0.0
  %870 = vmatpush1.msra.mxu0 %v49
  %871 = vmatprep.subr.mxu0 0.0
  %872 = vmatpush1.msra.mxu0 %v50
  %873 = vmatprep.subr.mxu0 0.0
  %874 = vmatpush1.msra.mxu0 %v51
  %875 = vmatprep.subr.mxu0 0.0
  %876 = vmatpush1.msra.mxu0 %v52
  %877 = vmatprep.subr.mxu0 0.0
  %878 = vmatpush1.msra.mxu0 0.0
  %879 = vmatprep.subr.mxu0 0.0
  %880 = vmatpush1.msra.mxu0 0.0
  %881 = vmatprep.subr.mxu0 0.0
  %882 = vmatpush1.msra.mxu0 0.0
  %883 = vmatprep.subr.mxu0 0.0
  %884 = vmatpush1.msra.mxu0 0.0
  %885 = vmatprep.subr.mxu0 0.0
  %886 = vmatpush1.msra.mxu0 0.0
  %887 = vmatprep.subr.mxu0 0.0
  %888 = vmatpush1.msra.mxu0 0.0
  %889 = vmatprep.subr.mxu0 0.0
  %890 = vmatpush1.msra.mxu0 0.0
  %891 = vmatprep.subr.mxu0 0.0
  %892 = vmatpush1.msra.mxu0 0.0
  %893 = vmatprep.subr.mxu0 0.0
  %894 = vmatpush1.msra.mxu0 0.0
  %895 = vmatprep.subr.mxu0 0.0
  %896 = vmatpush1.msra.mxu0 0.0
  %897 = vmatprep.subr.mxu0 0.0
  %898 = vmatpush1.msra.mxu0 0.0
  %899 = vmatprep.subr.mxu0 0.0
  %900 = vmatpush1.msra.mxu0 0.0
  %901 = vmatprep.subr.mxu0 0.0
  %902 = vmatpush1.msra.mxu0 0.0
  %903 = vmatprep.subr.mxu0 0.0
  %904 = vmatpush1.msra.mxu0 0.0
  %905 = vmatprep.subr.mxu0 0.0
  %906 = vmatpush1.msra.mxu0 0.0
  %907 = vmatprep.subr.mxu0 0.0
  %908 = vmatpush1.msra.mxu0 0.0
  %909 = vmatprep.subr.mxu0 0.0
  %910 = vmatpush1.msra.mxu0 0.0
  %911 = vmatprep.subr.mxu0 0.0
  %912 = vmatpush1.msra.mxu0 0.0
  %913 = vmatprep.subr.mxu0 0.0
  %914 = vmatpush1.msra.mxu0 0.0
  %915 = vmatprep.subr.mxu0 0.0
  %916 = vmatpush1.msra.mxu0 0.0
  %917 = vmatprep.subr.mxu0 0.0
  %918 = vmatpush1.msra.mxu0 0.0
  %919 = vmatprep.subr.mxu0 0.0
  %920 = vmatpush1.msra.mxu0 0.0
  %921 = vmatprep.subr.mxu0 0.0
  %922 = vmatpush1.msra.mxu0 0.0
  %923 = vmatprep.subr.mxu0 0.0
  %924 = vmatpush1.msra.mxu0 0.0
  %925 = vmatprep.mubr.f32.mxu0 0.0
  %926 = vmatmul.mubr.f32.gmra.mrb[0].mxu0 %v850
  %v927 = vpop.f32.mrb[0].mxu0
  %v928 = vadd.f32 0.0, %v927
  %v929 = vpop.f32.mrb[0].mxu0
  %930 = vmatprep.mubr.f32.mxu0 0.0
  %931 = vmatmul.mubr.f32.gmra.mrb[0].mxu0 %v853
  %v932 = vpop.f32.mrb[0].mxu0
  %v933 = vadd.f32 0.0, %v932
  %v934 = vpop.f32.mrb[0].mxu0
  %935 = vmatprep.mubr.f32.mxu0 0.0
  %936 = vmatmul.mubr.f32.gmra.mrb[0].mxu0 %v856
  %v937 = vpop.f32.mrb[0].mxu0
  %v938 = vadd.f32 0.0, %v937
  %v939 = vpop.f32.mrb[0].mxu0
  %940 = vmatprep.mubr.f32.mxu0 0.0
  %941 = vmatmul.mubr.f32.gmra.mrb[0].mxu0 %v859
  %v942 = vpop.f32.mrb[0].mxu0
  %v943 = vadd.f32 0.0, %v942
  %v944 = vpop.f32.mrb[0].mxu0
  %945 = vdwg.mxu0
  %v946 = vsel %vm55, %v928, 0.0
  %v947 = vsel %vm55, %v933, 0.0
  %v948 = vadd.f32 %v946, %v947
  %v949 = vsel %vm55, %v938, 0.0
  %v950 = vadd.f32 %v948, %v949
  %v951 = vsel %vm55, %v943, 0.0
  %v952 = vadd.f32 %v950, %v951
  %v953 = vrot.slane %v952, 4
  %v954 = vadd.f32 %v952, %v953
  %v955 = vrot.slane %v954, 2
  %v956 = vadd.f32 %v954, %v955
  %v957 = vrot.slane %v956, 1
  %v958 = vadd.f32 %v956, %v957
  %v959 = vsub.f32 %v843, %v958
  %v960 = vsub.f32 %v844, %v958
  %v961 = vsub.f32 %v845, %v958
  %v962 = vsub.f32 %v846, %v958
  %v963 = vmul.f32 %v959, %v959
  %v964 = vmul.f32 %v960, %v960
  %v965 = vmul.f32 %v961, %v961
  %v966 = vmul.f32 %v962, %v962
  %v968 = vsel %vm55, %v963, 0
  %v971 = vsel %vm55, %v964, 0
  %v974 = vsel %vm55, %v965, 0
  %v977 = vsel %vm55, %v966, 0
  %979 = vmatprep.subr.mxu0 0.0
  %980 = vmatpush1.msra.mxu0 %v45
  %981 = vmatprep.subr.mxu0 0.0
  %982 = vmatpush1.msra.mxu0 %v46
  %983 = vmatprep.subr.mxu0 0.0
  %984 = vmatpush1.msra.mxu0 %v47
  %985 = vmatprep.subr.mxu0 0.0
  %986 = vmatpush1.msra.mxu0 %v48
  %987 = vmatprep.subr.mxu0 0.0
  %988 = vmatpush1.msra.mxu0 %v49
  %989 = vmatprep.subr.mxu0 0.0
  %990 = vmatpush1.msra.mxu0 %v50
  %991 = vmatprep.subr.mxu0 0.0
  %992 = vmatpush1.msra.mxu0 %v51
  %993 = vmatprep.subr.mxu0 0.0
  %994 = vmatpush1.msra.mxu0 %v52
  %995 = vmatprep.subr.mxu0 0.0
  %996 = vmatpush1.msra.mxu0 0.0
  %997 = vmatprep.subr.mxu0 0.0
  %998 = vmatpush1.msra.mxu0 0.0
  %999 = vmatprep.subr.mxu0 0.0
  %1000 = vmatpush1.msra.mxu0 0.0
  %1001 = vmatprep.subr.mxu0 0.0
  %1002 = vmatpush1.msra.mxu0 0.0
  %1003 = vmatprep.subr.mxu0 0.0
  %1004 = vmatpush1.msra.mxu0 0.0
  %1005 = vmatprep.subr.mxu0 0.0
  %1006 = vmatpush1.msra.mxu0 0.0
  %1007 = vmatprep.subr.mxu0 0.0
  %1008 = vmatpush1.msra.mxu0 0.0
  %1009 = vmatprep.subr.mxu0 0.0
  %1010 = vmatpush1.msra.mxu0 0.0
  %1011 = vmatprep.subr.mxu0 0.0
  %1012 = vmatpush1.msra.mxu0 0.0
  %1013 = vmatprep.subr.mxu0 0.0
  %1014 = vmatpush1.msra.mxu0 0.0
  %1015 = vmatprep.subr.mxu0 0.0
  %1016 = vmatpush1.msra.mxu0 0.0
  %1017 = vmatprep.subr.mxu0 0.0
  %1018 = vmatpush1.msra.mxu0 0.0
  %1019 = vmatprep.subr.mxu0 0.0
  %1020 = vmatpush1.msra.mxu0 0.0
  %1021 = vmatprep.subr.mxu0 0.0
  %1022 = vmatpush1.msra.mxu0 0.0
  %1023 = vmatprep.subr.mxu0 0.0
  %1024 = vmatpush1.msra.mxu0 0.0
  %1025 = vmatprep.subr.mxu0 0.0
  %1026 = vmatpush1.msra.mxu0 0.0
  %1027 = vmatprep.subr.mxu0 0.0
  %1028 = vmatpush1.msra.mxu0 0.0
  %1029 = vmatprep.subr.mxu0 0.0
  %1030 = vmatpush1.msra.mxu0 0.0
  %1031 = vmatprep.subr.mxu0 0.0
  %1032 = vmatpush1.msra.mxu0 0.0
  %1033 = vmatprep.subr.mxu0 0.0
  %1034 = vmatpush1.msra.mxu0 0.0
  %1035 = vmatprep.subr.mxu0 0.0
  %1036 = vmatpush1.msra.mxu0 0.0
  %1037 = vmatprep.subr.mxu0 0.0
  %1038 = vmatpush1.msra.mxu0 0.0
  %1039 = vmatprep.subr.mxu0 0.0
  %1040 = vmatpush1.msra.mxu0 0.0
  %1041 = vmatprep.subr.mxu0 0.0
  %1042 = vmatpush1.msra.mxu0 0.0
  %1043 = vmatprep.mubr.f32.mxu0 0.0
  %1044 = vmatmul.mubr.f32.gmra.mrb[0].mxu0 %v968
  %v1045 = vpop.f32.mrb[0].mxu0
  %v1046 = vadd.f32 0.0, %v1045
  %v1047 = vpop.f32.mrb[0].mxu0
  %1048 = vmatprep.mubr.f32.mxu0 0.0
  %1049 = vmatmul.mubr.f32.gmra.mrb[0].mxu0 %v971
  %v1050 = vpop.f32.mrb[0].mxu0
  %v1051 = vadd.f32 0.0, %v1050
  %v1052 = vpop.f32.mrb[0].mxu0
  %1053 = vmatprep.mubr.f32.mxu0 0.0
  %1054 = vmatmul.mubr.f32.gmra.mrb[0].mxu0 %v974
  %v1055 = vpop.f32.mrb[0].mxu0
  %v1056 = vadd.f32 0.0, %v1055
  %v1057 = vpop.f32.mrb[0].mxu0
  %1058 = vmatprep.mubr.f32.mxu0 0.0
  %1059 = vmatmul.mubr.f32.gmra.mrb[0].mxu0 %v977
  %v1060 = vpop.f32.mrb[0].mxu0
  %v1061 = vadd.f32 0.0, %v1060
  %v1062 = vpop.f32.mrb[0].mxu0
  %1063 = vdwg.mxu0
  %v1064 = vsel %vm55, %v1046, 0.0
  %v1065 = vsel %vm55, %v1051, 0.0
  %v1066 = vadd.f32 %v1064, %v1065
  %v1067 = vsel %vm55, %v1056, 0.0
  %v1068 = vadd.f32 %v1066, %v1067
  %v1069 = vsel %vm55, %v1061, 0.0
  %v1070 = vadd.f32 %v1068, %v1069
  %v1071 = vrot.slane %v1070, 4
  %v1072 = vadd.f32 %v1070, %v1071
  %v1073 = vrot.slane %v1072, 2
  %v1074 = vadd.f32 %v1072, %v1073
  %v1075 = vrot.slane %v1074, 1
  %v1076 = vadd.f32 %v1074, %v1075
  %v1077 = vadd.f32 %v1076, 1e-05
  %v1078 = vrsqrt.pop %v1077
  %v1079 = vmul.f32 %v959, %v1078
  %v1080 = vmul.f32 %v960, %v1078
  %v1081 = vmul.f32 %v961, %v1078
  %v1082 = vmul.f32 %v962, %v1078
  %v1084 = vlaneseq
  %v1085 = vshrl.u32 %v1084, 7
  %v1086 = vsub.s32 0, %v1085
  %v1087 = vrot.slane %v847, %v1086
  %v1089 = vmul.f32 %v1079, %v1087
  %v1090 = vmul.f32 %v1080, %v1087
  %v1091 = vmul.f32 %v1081, %v1087
  %v1092 = vmul.f32 %v1082, %v1087
  %v1094 = vlaneseq
  %v1095 = vshrl.u32 %v1094, 7
  %v1096 = vsub.s32 0, %v1095
  %v1097 = vrot.slane %v848, %v1096
  %v1099 = vadd.f32 %v1089, %v1097
  %v1100 = vadd.f32 %v1090, %v1097
  %v1101 = vadd.f32 %v1091, %v1097
  %v1102 = vadd.f32 %v1092, %v1097
  %v1103 = vmax.f32 %v1099, 0.0
  %v1104 = vmax.f32 %v1100, 0.0
  %v1105 = vmax.f32 %v1101, 0.0
  %v1106 = vmax.f32 %v1102, 0.0
  %v1107 = vld [vmem:[%s10] sm:$0xff]
  %v1108 = vld [vmem:[%s10 + $0x8] sm:$0xff]
  %v1109 = vld [vmem:[%s10 + $0x10] sm:$0xff]
  %v1110 = vld [vmem:[%s10 + $0x18] sm:$0xff]
  %v1111 = vld [vmem:[%s10 + $0x20] sm:$0xff]
  %v1112 = vld [vmem:[%s10 + $0x28] sm:$0xff]
  %v1113 = vld [vmem:[%s10 + $0x30] sm:$0xff]
  %v1114 = vld [vmem:[%s10 + $0x38] sm:$0xff]
  %v1115 = vld [vmem:[%s11] sm:$0x1]
  %v1117 = vlaneseq
  %v1118 = vshrl.u32 %v1117, 7
  %v1119 = vsub.s32 0, %v1118
  %v1120 = vrot.slane %v1115, %v1119
  %v1123 = vsel %vm55, %v1103, 0
  %v1126 = vsel %vm55, %v1104, 0
  %v1129 = vsel %vm55, %v1105, 0
  %v1132 = vsel %vm55, %v1106, 0
  %1134 = vmatprep.subr.mxu0 0.0
  %1135 = vmatpush1.msra.mxu0 %v1107
  %1136 = vmatprep.subr.mxu0 0.0
  %1137 = vmatpush1.msra.mxu0 %v1108
  %1138 = vmatprep.subr.mxu0 0.0
  %1139 = vmatpush1.msra.mxu0 %v1109
  %1140 = vmatprep.subr.mxu0 0.0
  %1141 = vmatpush1.msra.mxu0 %v1110
  %1142 = vmatprep.subr.mxu0 0.0
  %1143 = vmatpush1.msra.mxu0 %v1111
  %1144 = vmatprep.subr.mxu0 0.0
  %1145 = vmatpush1.msra.mxu0 %v1112
  %1146 = vmatprep.subr.mxu0 0.0
  %1147 = vmatpush1.msra.mxu0 %v1113
  %1148 = vmatprep.subr.mxu0 0.0
  %1149 = vmatpush1.msra.mxu0 %v1114
  %1150 = vmatprep.subr.mxu0 0.0
  %1151 = vmatpush1.msra.mxu0 0.0
  %1152 = vmatprep.subr.mxu0 0.0
  %1153 = vmatpush1.msra.mxu0 0.0
  %1154 = vmatprep.subr.mxu0 0.0
  %1155 = vmatpush1.msra.mxu0 0.0
  %1156 = vmatprep.subr.mxu0 0.0
  %1157 = vmatpush1.msra.mxu0 0.0
  %1158 = vmatprep.subr.mxu0 0.0
  %1159 = vmatpush1.msra.mxu0 0.0
  %1160 = vmatprep.subr.mxu0 0.0
  %1161 = vmatpush1.msra.mxu0 0.0
  %1162 = vmatprep.subr.mxu0 0.0
  %1163 = vmatpush1.msra.mxu0 0.0
  %1164 = vmatprep.subr.mxu0 0.0
  %1165 = vmatpush1.msra.mxu0 0.0
  %1166 = vmatprep.subr.mxu0 0.0
  %1167 = vmatpush1.msra.mxu0 0.0
  %1168 = vmatprep.subr.mxu0 0.0
  %1169 = vmatpush1.msra.mxu0 0.0
  %1170 = vmatprep.subr.mxu0 0.0
  %1171 = vmatpush1.msra.mxu0 0.0
  %1172 = vmatprep.subr.mxu0 0.0
  %1173 = vmatpush1.msra.mxu0 0.0
  %1174 = vmatprep.subr.mxu0 0.0
  %1175 = vmatpush1.msra.mxu0 0.0
  %1176 = vmatprep.subr.mxu0 0.0
  %1177 = vmatpush1.msra.mxu0 0.0
  %1178 = vmatprep.subr.mxu0 0.0
  %1179 = vmatpush1.msra.mxu0 0.0
  %1180 = vmatprep.subr.mxu0 0.0
  %1181 = vmatpush1.msra.mxu0 0.0
  %1182 = vmatprep.subr.mxu0 0.0
  %1183 = vmatpush1.msra.mxu0 0.0
  %1184 = vmatprep.subr.mxu0 0.0
  %1185 = vmatpush1.msra.mxu0 0.0
  %1186 = vmatprep.subr.mxu0 0.0
  %1187 = vmatpush1.msra.mxu0 0.0
  %1188 = vmatprep.subr.mxu0 0.0
  %1189 = vmatpush1.msra.mxu0 0.0
  %1190 = vmatprep.subr.mxu0 0.0
  %1191 = vmatpush1.msra.mxu0 0.0
  %1192 = vmatprep.subr.mxu0 0.0
  %1193 = vmatpush1.msra.mxu0 0.0
  %1194 = vmatprep.subr.mxu0 0.0
  %1195 = vmatpush1.msra.mxu0 0.0
  %1196 = vmatprep.subr.mxu0 0.0
  %1197 = vmatpush1.msra.mxu0 0.0
  %1198 = vmatprep.mubr.f32.mxu0 0.0
  %1199 = vmatmul.mubr.f32.gmra.mrb[0].mxu0 %v1123
  %v1200 = vpop.f32.mrb[0].mxu0
  %v1201 = vadd.f32 %v1120, %v1200
  %v1202 = vpop.f32.mrb[0].mxu0
  %1203 = vmatprep.mubr.f32.mxu0 0.0
  %1204 = vmatmul.mubr.f32.gmra.mrb[0].mxu0 %v1126
  %v1205 = vpop.f32.mrb[0].mxu0
  %v1206 = vadd.f32 %v1120, %v1205
  %v1207 = vpop.f32.mrb[0].mxu0
  %1208 = vmatprep.mubr.f32.mxu0 0.0
  %1209 = vmatmul.mubr.f32.gmra.mrb[0].mxu0 %v1129
  %v1210 = vpop.f32.mrb[0].mxu0
  %v1211 = vadd.f32 %v1120, %v1210
  %v1212 = vpop.f32.mrb[0].mxu0
  %1213 = vmatprep.mubr.f32.mxu0 0.0
  %1214 = vmatmul.mubr.f32.gmra.mrb[0].mxu0 %v1132
  %v1215 = vpop.f32.mrb[0].mxu0
  %v1216 = vadd.f32 %v1120, %v1215
  %v1217 = vpop.f32.mrb[0].mxu0
  %1218 = vdwg.mxu0
  %v1219 = vadd.f32 %v41, %v1201
  %v1220 = vadd.f32 %v42, %v1206
  %v1221 = vadd.f32 %v43, %v1211
  %v1222 = vadd.f32 %v44, %v1216
  %1223 = vst.msk [vmem:[%s12] sm:$0xff] %vm55, %v1219
  %1224 = vst.msk [vmem:[%s12 + $0x8] sm:$0xff] %vm55, %v1220
  %1225 = vst.msk [vmem:[%s12 + $0x10] sm:$0xff] %vm55, %v1221
  %1226 = vst.msk [vmem:[%s12 + $0x18] sm:$0xff] %vm55, %v1222
  // Predicated region
  $region50: #{residual_block.1} parent=0 // pred_check
    _
  $region51: #{residual_block.1} parent=0 // pred_check_branch
    %1228 = sbr.rel (0) target = $region53
  $region52: #{residual_block.1} parent=0 // pred_region
    _
  $region53: #{residual_block.1} parent=0 // pred_fallthru
    _
  // Predicated region
  $region54: #{residual_block.1} parent=0 // pred_check
    _
  $region55: #{residual_block.1} parent=0 // pred_check_branch
    %1230 = sbr.rel (0) target = $region57
  $region56: #{residual_block.1} parent=0 // pred_region
    _
  $region57: #{residual_block.1} parent=0 // pred_fallthru
    _

</llo_original>
